<compile_context>
chip_gen: v5e
topology: v5e:2x2
jax: 0.10.0
libtpu: 0.0.40
codegen_flags: <defaults>
</compile_context>

<pallas_src>
import jax
import jax.numpy as jnp
from jax.experimental import pallas as pl
from jax.experimental.pallas import tpu as pltpu

_LANE = 128
_SUBLANE = 8


def _round_up(n, m):
    return ((n + m - 1) // m) * m


def _linear_kernel(x_ref, w_ref, b_ref, o_ref):
    # x_ref: (TB, F)     VMEM  (tile of the batch)
    # w_ref: (Cpad, F)   VMEM  (PyTorch-layout weight, zero-padded classes; resident)
    # b_ref: (1, Cpad)   VMEM  (zero-padded bias row; resident)
    # o_ref: (TB, Cpad)  VMEM  (lane-dense logits tile)
    acc = jax.lax.dot_general(
        x_ref[...], w_ref[...],
        dimension_numbers=(((1,), (1,)), ((), ())),   # x @ w^T, no HBM transpose
        preferred_element_type=jnp.float32,
    )
    o_ref[...] = (acc + b_ref[...]).astype(o_ref.dtype)


def logistic_regression_forward(x, weight, bias):
    """logits = x @ weight.T + bias (exactly nn.Linear forward).

    x: (B, F) f32, weight: (C, F) f32 (PyTorch layout), bias: (C,) f32.
    """
    B, F = x.shape
    C = weight.shape[0]

    Cpad = _round_up(C, _LANE)                # lane-dense class dim (10 -> 128)
    TB = min(512, _round_up(B, _SUBLANE))     # batch tile, sublane-aligned
    Bp = _round_up(B, TB)

    # Cheap one-time padding in the wrapper (XLA); sliced back after the kernel.
    xp = x if Bp == B else jnp.pad(x, ((0, Bp - B), (0, 0)))
    wp = weight if Cpad == C else jnp.pad(weight, ((0, Cpad - C), (0, 0)))
    bp = (bias if Cpad == C else jnp.pad(bias, (0, Cpad - C))).reshape(1, Cpad)

    out = pl.pallas_call(
        _linear_kernel,
        out_shape=jax.ShapeDtypeStruct((Bp, Cpad), x.dtype),
        grid_spec=pltpu.PrefetchScalarGridSpec(
            num_scalar_prefetch=0,
            grid=(Bp // TB,),
            in_specs=[
                pl.BlockSpec((TB, F), lambda i: (i, 0)),      # x tile, pipelined
                pl.BlockSpec((Cpad, F), lambda i: (0, 0)),    # weight, VMEM-resident
                pl.BlockSpec((1, Cpad), lambda i: (0, 0)),    # bias, VMEM-resident
            ],
            out_specs=pl.BlockSpec((TB, Cpad), lambda i: (i, 0)),
        ),
        compiler_params=pltpu.CompilerParams(
            dimension_semantics=("parallel",),          # shard batch across TCs on v7x
            vmem_limit_bytes=32 * 1024 * 1024,          # fits v5e/v6e/v7x budgets
        ),
    )(xp, wp, bp)

    return out[:B, :C]


def predict(x, weight, bias):
    """Matches LogisticRegression.predict: argmax(softmax(logits, dim=0), dim=1).

    NOTE: softmax over dim=0 is what the PyTorch module literally does (per-column
    normalization); we replicate the exact op order for fidelity. Padded class
    columns are already sliced off inside `logistic_regression_forward`.
    """
    logits = logistic_regression_forward(x, weight, bias)
    soft = jax.nn.softmax(logits, axis=0)
    return jnp.argmax(soft, axis=1)


if __name__ == "__main__":
    # config: height=16, width=16, channels=3, classes=10
    height, width, channels, classes = 16, 16, 3, 10
    input_size = height * width * channels  # 768
    batch = 8

    key = jax.random.PRNGKey(0)
    kx, kw, kb = jax.random.split(key, 3)

    x = jax.random.normal(kx, (batch, input_size), dtype=jnp.float32)
    # Deterministic param init (PyTorch-Linear-like uniform bound 1/sqrt(fan_in))
    bound = 1.0 / jnp.sqrt(jnp.float32(input_size))
    weight = jax.random.uniform(kw, (classes, input_size), jnp.float32, -bound, bound)
    bias = jax.random.uniform(kb, (classes,), jnp.float32, -bound, bound)

    logits = jax.block_until_ready(logistic_regression_forward(x, weight, bias))

    # sanity check against plain JAX reference
    ref = x @ weight.T + bias
    assert logits.shape == (batch, classes)
    assert jnp.allclose(logits, ref, atol=1e-5, rtol=1e-5)

    preds = jax.block_until_ready(predict(x, weight, bias))
    ref_preds = jnp.argmax(jax.nn.softmax(ref, axis=0), axis=1)
    assert preds.shape == (batch,)
    assert jnp.array_equal(preds, ref_preds)

    print("KERNEL_OK")
</pallas_src>

<mosaic_0001>
module attributes {stable_mosaic.version = 11 : i64} {
  func.func @_linear_kernel(%arg0: i32, %arg1: memref<8x768xf32, #tpu.memory_space<vmem>>, %arg2: memref<128x768xf32, #tpu.memory_space<vmem>>, %arg3: memref<1x128xf32, #tpu.memory_space<vmem>>, %arg4: memref<8x128xf32, #tpu.memory_space<vmem>>) attributes {dimension_semantics = [#tpu.dimension_semantics<parallel>], iteration_bounds = array<i64: 1>, scalar_prefetch = 0 : i64, scratch_operands = 0 : i64, tpu.core_type = #tpu.core_type<tc>, window_params = [{transform_indices = @transform_0, window_bounds = array<i64: 8, 768>}, {pipeline_mode = #tpu.pipeline_mode<synchronous>, transform_indices = @transform_1, window_bounds = array<i64: 128, 768>}, {pipeline_mode = #tpu.pipeline_mode<synchronous>, transform_indices = @transform_2, window_bounds = array<i64: 1, 128>}, {transform_indices = @transform_3, window_bounds = array<i64: 8, 128>}]} {
    %c0 = arith.constant 0 : index
    %c0_0 = arith.constant 0 : index
    %0 = vector.load %arg1[%c0, %c0_0] : memref<8x768xf32, #tpu.memory_space<vmem>>, vector<8x768xf32>
    %c0_1 = arith.constant 0 : index
    %c0_2 = arith.constant 0 : index
    %1 = vector.load %arg2[%c0_1, %c0_2] : memref<128x768xf32, #tpu.memory_space<vmem>>, vector<128x768xf32>
    %cst = arith.constant dense<0.000000e+00> : vector<8x128xf32>
    %2 = tpu.matmul %0, %1, %cst {dimension_numbers = #tpu.dot_dimension_numbers<[1], [1], [0], [0], [0, 0, 1, 0], [], []>} : vector<8x768xf32>, vector<128x768xf32>, vector<8x128xf32> -> vector<8x128xf32>
    %c0_3 = arith.constant 0 : index
    %c0_4 = arith.constant 0 : index
    %3 = vector.load %arg3[%c0_3, %c0_4] : memref<1x128xf32, #tpu.memory_space<vmem>>, vector<1x128xf32>
    %4 = vector.broadcast %3 : vector<1x128xf32> to vector<8x128xf32>
    %5 = arith.addf %2, %4 : vector<8x128xf32>
    %c0_5 = arith.constant 0 : index
    %c0_6 = arith.constant 0 : index
    %6 = vector.load %arg4[%c0_5, %c0_6] : memref<8x128xf32, #tpu.memory_space<vmem>>, vector<8x128xf32>
    tpu.vector_store %arg4[%c0_5, %c0_6], %5 {strides = array<i32>} : memref<8x128xf32, #tpu.memory_space<vmem>>, vector<8x128xf32>,
    return
  }
  func.func @transform_0(%arg0: i32) -> (i32, i32) {
    %c0_i32 = arith.constant 0 : i32
    %c0_i32_0 = arith.constant 0 : i32
    return %arg0, %c0_i32 : i32, i32
  }
  func.func @transform_1(%arg0: i32) -> (i32, i32) {
    %c0_i32 = arith.constant 0 : i32
    %c0_i32_0 = arith.constant 0 : i32
    %c0_i32_1 = arith.constant 0 : i32
    return %c0_i32, %c0_i32_0 : i32, i32
  }
  func.func @transform_2(%arg0: i32) -> (i32, i32) {
    %c0_i32 = arith.constant 0 : i32
    %c0_i32_0 = arith.constant 0 : i32
    %c0_i32_1 = arith.constant 0 : i32
    return %c0_i32, %c0_i32_0 : i32, i32
  }
  func.func @transform_3(%arg0: i32) -> (i32, i32) {
    %c0_i32 = arith.constant 0 : i32
    %c0_i32_0 = arith.constant 0 : i32
    return %arg0, %c0_i32 : i32, i32
  }
}

</mosaic_0001>

<llo_original>
// kernel: tpu_custom_call.1
$region0: #{tpu_custom_call.1}
  #allocation0 [shape = 'u32[]', space=smem, size = 0x4, offset = 0x4, fixed_abs, tag = 'smem constant byte address 0x4 - core index']
  #allocation1 [shape = 'u32[72,128]{1,0:T(1,128)}', space=vmem, size = 0x9000, scoped, tag = 'internal scratch']
  %s0 = inlined_call_operand.hbm [shape: f32[8,768], index: 0, kind: input, shape index: {}]
  %s1 = inlined_call_operand.hbm [shape: f32[128,768], index: 1, kind: input, shape index: {}]
  %s2 = inlined_call_operand.vmem [shape: f32[1,128], index: 2, kind: input, shape index: {}]
  %s3 = inlined_call_operand.hbm [shape: f32[8,128], index: 3, kind: output, shape index: {}]
  %s4 = sld [smem:[#allocation0]]
  $region30: #{tpu_custom_call.1} parent=0
    _
  %s6 = ssub.s32 1, %s4
  %s7 = scalar_select 0, %s6, %s4
  $region1: #{tpu_custom_call.1} parent=0
    #allocation2 [shape = 'u8[24576]{0}', space=vmem, size = 0x6000, scoped, tag = 'input window, operand 0, single buffered']
    #allocation3 [shape = 's32[1]{0}', space=sflag, size = 0x4, scoped, tag = 'scoped memory for tpu_custom_call.1']
    #allocation4 [shape = 's32[1]{0}', space=sflag, size = 0x4, scoped, tag = 'scoped memory for tpu_custom_call.1']
    #allocation5 [shape = 'u8[393216]{0}', space=vmem, size = 0x60000, scoped, tag = 'input window, operand 1, single buffered']
    #allocation6 [shape = 's32[1]{0}', space=sflag, size = 0x4, scoped, tag = 'scoped memory for tpu_custom_call.1']
    #allocation7 [shape = 'u8[4096]{0}', space=vmem, size = 0x1000, scoped, tag = 'output window, operand 0, single buffered']
    %8 = vsyncpa [#allocation3], 0
    %9 = vsyncpa [#allocation6], 0
    %10 = vsyncpa [#allocation4], 0
    // Predicated region
    $region2: #{tpu_custom_call.1} parent=1 // pred_check
      _
    $region3: #{tpu_custom_call.1} parent=1 // pred_check_branch
      %12 = sbr.rel (0) target = $region5
    $region4: #{tpu_custom_call.1} parent=1 // pred_region
      %14 = vsyncadd [#allocation3], 0
      %s16 = sshll.u32 %s0, 4
      %s17 = int_to_ptr.hbm [resolvable:$true] %s16
      %s18 = sshll.u32 [#allocation2], 4
      %s19 = int_to_ptr.vmem [resolvable:$true] %s18
      %21 = dma.hbm_to_vmem [thread:$0]  %s17, 768, %s19, [#allocation3]
    $region5: #{tpu_custom_call.1} parent=1 // pred_fallthru
      _
    // Predicated region
    $region6: #{tpu_custom_call.1} parent=1 // pred_check
      _
    $region7: #{tpu_custom_call.1} parent=1 // pred_check_branch
      %23 = sbr.rel (0) target = $region9
    $region8: #{tpu_custom_call.1} parent=1 // pred_region
      %25 = vsyncadd [#allocation6], 0
      %s26 = sshll.u32 %s1, 4
      %s27 = int_to_ptr.hbm [resolvable:$true] %s26
      %s28 = sshll.u32 [#allocation5], 4
      %s29 = int_to_ptr.vmem [resolvable:$true] %s28
      %34 = dma.hbm_to_vmem [thread:$0]  %s27, 12288, %s29, [#allocation6], 768, 768, 48
    $region9: #{tpu_custom_call.1} parent=1 // pred_fallthru
      _
    // Predicated region
    $region10: #{tpu_custom_call.1} parent=1 // pred_check
      _
    $region11: #{tpu_custom_call.1} parent=1 // pred_check_branch
      %36 = sbr.rel (0) target = $region13
    $region12: #{tpu_custom_call.1} parent=1 // pred_region
      _
    $region13: #{tpu_custom_call.1} parent=1 // pred_fallthru
      _
    // Predicated region
    $region14: #{tpu_custom_call.1} parent=1 // pred_check
      _
    $region15: #{tpu_custom_call.1} parent=1 // pred_check_branch
      %38 = sbr.rel (0) target = $region17
    $region16: #{tpu_custom_call.1} parent=1 // pred_region
      %40 = dma.done [#allocation3], 768
    $region17: #{tpu_custom_call.1} parent=1 // pred_fallthru
      _
    // Predicated region
    $region18: #{tpu_custom_call.1} parent=1 // pred_check
      _
    $region19: #{tpu_custom_call.1} parent=1 // pred_check_branch
      %42 = sbr.rel (0) target = $region21
    $region20: #{tpu_custom_call.1} parent=1 // pred_region
      %44 = dma.done [#allocation6], 12288
    $region21: #{tpu_custom_call.1} parent=1 // pred_fallthru
      _
    %v45 = vld [vmem:[#allocation2] sm:$0xff]
    %v46 = vld [vmem:[#allocation2 + $0x8] sm:$0xff]
    %v47 = vld [vmem:[#allocation2 + $0x10] sm:$0xff]
    %v48 = vld [vmem:[#allocation2 + $0x18] sm:$0xff]
    %v49 = vld [vmem:[#allocation2 + $0x20] sm:$0xff]
    %v50 = vld [vmem:[#allocation2 + $0x28] sm:$0xff]
    %v51 = vld [vmem:[#allocation5] sm:$0xff]
    %v52 = vld [vmem:[#allocation5 + $0x8] sm:$0xff]
    %v53 = vld [vmem:[#allocation5 + $0x10] sm:$0xff]
    %v54 = vld [vmem:[#allocation5 + $0x18] sm:$0xff]
    %v55 = vld [vmem:[#allocation5 + $0x20] sm:$0xff]
    %v56 = vld [vmem:[#allocation5 + $0x28] sm:$0xff]
    %v57 = vld [vmem:[#allocation5 + $0x30] sm:$0xff]
    %v58 = vld [vmem:[#allocation5 + $0x38] sm:$0xff]
    %v59 = vld [vmem:[#allocation5 + $0x40] sm:$0xff]
    %v60 = vld [vmem:[#allocation5 + $0x48] sm:$0xff]
    %v61 = vld [vmem:[#allocation5 + $0x50] sm:$0xff]
    %v62 = vld [vmem:[#allocation5 + $0x58] sm:$0xff]
    %v63 = vld [vmem:[#allocation5 + $0x60] sm:$0xff]
    %v64 = vld [vmem:[#allocation5 + $0x68] sm:$0xff]
    %v65 = vld [vmem:[#allocation5 + $0x70] sm:$0xff]
    %v66 = vld [vmem:[#allocation5 + $0x78] sm:$0xff]
    %v67 = vld [vmem:[#allocation5 + $0x80] sm:$0xff]
    %v68 = vld [vmem:[#allocation5 + $0x88] sm:$0xff]
    %v69 = vld [vmem:[#allocation5 + $0x90] sm:$0xff]
    %v70 = vld [vmem:[#allocation5 + $0x98] sm:$0xff]
    %v71 = vld [vmem:[#allocation5 + $0xa0] sm:$0xff]
    %v72 = vld [vmem:[#allocation5 + $0xa8] sm:$0xff]
    %v73 = vld [vmem:[#allocation5 + $0xb0] sm:$0xff]
    %v74 = vld [vmem:[#allocation5 + $0xb8] sm:$0xff]
    %v75 = vld [vmem:[#allocation5 + $0xc0] sm:$0xff]
    %v76 = vld [vmem:[#allocation5 + $0xc8] sm:$0xff]
    %v77 = vld [vmem:[#allocation5 + $0xd0] sm:$0xff]
    %v78 = vld [vmem:[#allocation5 + $0xd8] sm:$0xff]
    %v79 = vld [vmem:[#allocation5 + $0xe0] sm:$0xff]
    %v80 = vld [vmem:[#allocation5 + $0xe8] sm:$0xff]
    %v81 = vld [vmem:[#allocation5 + $0xf0] sm:$0xff]
    %v82 = vld [vmem:[#allocation5 + $0xf8] sm:$0xff]
    %v83 = vld [vmem:[#allocation5 + $0x100] sm:$0xff]
    %v84 = vld [vmem:[#allocation5 + $0x108] sm:$0xff]
    %v85 = vld [vmem:[#allocation5 + $0x110] sm:$0xff]
    %v86 = vld [vmem:[#allocation5 + $0x118] sm:$0xff]
    %v87 = vld [vmem:[#allocation5 + $0x120] sm:$0xff]
    %v88 = vld [vmem:[#allocation5 + $0x128] sm:$0xff]
    %v89 = vld [vmem:[#allocation5 + $0x130] sm:$0xff]
    %v90 = vld [vmem:[#allocation5 + $0x138] sm:$0xff]
    %v91 = vld [vmem:[#allocation5 + $0x140] sm:$0xff]
    %v92 = vld [vmem:[#allocation5 + $0x148] sm:$0xff]
    %v93 = vld [vmem:[#allocation5 + $0x150] sm:$0xff]
    %v94 = vld [vmem:[#allocation5 + $0x158] sm:$0xff]
    %v95 = vld [vmem:[#allocation5 + $0x160] sm:$0xff]
    %v96 = vld [vmem:[#allocation5 + $0x168] sm:$0xff]
    %v97 = vld [vmem:[#allocation5 + $0x170] sm:$0xff]
    %v98 = vld [vmem:[#allocation5 + $0x178] sm:$0xff]
    %v99 = vld [vmem:[#allocation5 + $0x180] sm:$0xff]
    %v100 = vld [vmem:[#allocation5 + $0x188] sm:$0xff]
    %v101 = vld [vmem:[#allocation5 + $0x190] sm:$0xff]
    %v102 = vld [vmem:[#allocation5 + $0x198] sm:$0xff]
    %v103 = vld [vmem:[#allocation5 + $0x1a0] sm:$0xff]
    %v104 = vld [vmem:[#allocation5 + $0x1a8] sm:$0xff]
    %v105 = vld [vmem:[#allocation5 + $0x1b0] sm:$0xff]
    %v106 = vld [vmem:[#allocation5 + $0x1b8] sm:$0xff]
    %v107 = vld [vmem:[#allocation5 + $0x1c0] sm:$0xff]
    %v108 = vld [vmem:[#allocation5 + $0x1c8] sm:$0xff]
    %v109 = vld [vmem:[#allocation5 + $0x1d0] sm:$0xff]
    %v110 = vld [vmem:[#allocation5 + $0x1d8] sm:$0xff]
    %v111 = vld [vmem:[#allocation5 + $0x1e0] sm:$0xff]
    %v112 = vld [vmem:[#allocation5 + $0x1e8] sm:$0xff]
    %v113 = vld [vmem:[#allocation5 + $0x1f0] sm:$0xff]
    %v114 = vld [vmem:[#allocation5 + $0x1f8] sm:$0xff]
    %v115 = vld [vmem:[#allocation5 + $0x200] sm:$0xff]
    %v116 = vld [vmem:[#allocation5 + $0x208] sm:$0xff]
    %v117 = vld [vmem:[#allocation5 + $0x210] sm:$0xff]
    %v118 = vld [vmem:[#allocation5 + $0x218] sm:$0xff]
    %v119 = vld [vmem:[#allocation5 + $0x220] sm:$0xff]
    %v120 = vld [vmem:[#allocation5 + $0x228] sm:$0xff]
    %v121 = vld [vmem:[#allocation5 + $0x230] sm:$0xff]
    %v122 = vld [vmem:[#allocation5 + $0x238] sm:$0xff]
    %v123 = vld [vmem:[#allocation5 + $0x240] sm:$0xff]
    %v124 = vld [vmem:[#allocation5 + $0x248] sm:$0xff]
    %v125 = vld [vmem:[#allocation5 + $0x250] sm:$0xff]
    %v126 = vld [vmem:[#allocation5 + $0x258] sm:$0xff]
    %v127 = vld [vmem:[#allocation5 + $0x260] sm:$0xff]
    %v128 = vld [vmem:[#allocation5 + $0x268] sm:$0xff]
    %v129 = vld [vmem:[#allocation5 + $0x270] sm:$0xff]
    %v130 = vld [vmem:[#allocation5 + $0x278] sm:$0xff]
    %v131 = vld [vmem:[#allocation5 + $0x280] sm:$0xff]
    %v132 = vld [vmem:[#allocation5 + $0x288] sm:$0xff]
    %v133 = vld [vmem:[#allocation5 + $0x290] sm:$0xff]
    %v134 = vld [vmem:[#allocation5 + $0x298] sm:$0xff]
    %v135 = vld [vmem:[#allocation5 + $0x2a0] sm:$0xff]
    %v136 = vld [vmem:[#allocation5 + $0x2a8] sm:$0xff]
    %v137 = vld [vmem:[#allocation5 + $0x2b0] sm:$0xff]
    %v138 = vld [vmem:[#allocation5 + $0x2b8] sm:$0xff]
    %v139 = vld [vmem:[#allocation5 + $0x2c0] sm:$0xff]
    %v140 = vld [vmem:[#allocation5 + $0x2c8] sm:$0xff]
    %v141 = vld [vmem:[#allocation5 + $0x2d0] sm:$0xff]
    %v142 = vld [vmem:[#allocation5 + $0x2d8] sm:$0xff]
    %v143 = vld [vmem:[#allocation5 + $0x2e0] sm:$0xff]
    %v144 = vld [vmem:[#allocation5 + $0x2e8] sm:$0xff]
    %v145 = vld [vmem:[#allocation5 + $0x2f0] sm:$0xff]
    %v146 = vld [vmem:[#allocation5 + $0x2f8] sm:$0xff]
    %v147 = vld [vmem:[%s2] sm:$0x1]
    %v149 = vperm.slane %v147, 0
    %151 = vmatpush.xpose.msra.mxu0 %v141
    %152 = vmatpush.xpose.msra.mxu0 %v135
    %153 = vmatpush.xpose.msra.mxu0 %v129
    %154 = vmatpush.xpose.msra.mxu0 %v123
    %155 = vmatpush.xpose.msra.mxu0 %v117
    %156 = vmatpush.xpose.msra.mxu0 %v111
    %157 = vmatpush.xpose.msra.mxu0 %v105
    %158 = vmatpush.xpose.msra.mxu0 %v99
    %159 = vmatpush.xpose.msra.mxu0 %v93
    %160 = vmatpush.xpose.msra.mxu0 %v87
    %161 = vmatpush.xpose.msra.mxu0 %v81
    %162 = vmatpush.xpose.msra.mxu0 %v75
    %163 = vmatpush.xpose.msra.mxu0 %v69
    %164 = vmatpush.xpose.msra.mxu0 %v63
    %165 = vmatpush.xpose.msra.mxu0 %v57
    %166 = vmatpush.xpose.msra.mxu0 %v51
    %167 = vmatmul.f32.gmra.mxu0 %v45
    %v168 = vpop.f32.mrf.mxu0
    %v169 = vadd.f32 %v149, %v168
    %170 = vdwg.mxu0
    %171 = vmatpush.xpose.msra.mxu0 %v142
    %172 = vmatpush.xpose.msra.mxu0 %v136
    %173 = vmatpush.xpose.msra.mxu0 %v130
    %174 = vmatpush.xpose.msra.mxu0 %v124
    %175 = vmatpush.xpose.msra.mxu0 %v118
    %176 = vmatpush.xpose.msra.mxu0 %v112
    %177 = vmatpush.xpose.msra.mxu0 %v106
    %178 = vmatpush.xpose.msra.mxu0 %v100
    %179 = vmatpush.xpose.msra.mxu0 %v94
    %180 = vmatpush.xpose.msra.mxu0 %v88
    %181 = vmatpush.xpose.msra.mxu0 %v82
    %182 = vmatpush.xpose.msra.mxu0 %v76
    %183 = vmatpush.xpose.msra.mxu0 %v70
    %184 = vmatpush.xpose.msra.mxu0 %v64
    %185 = vmatpush.xpose.msra.mxu0 %v58
    %186 = vmatpush.xpose.msra.mxu0 %v52
    %187 = vmatmul.f32.gmra.mxu0 %v46
    %v188 = vpop.f32.mrf.mxu0
    %v189 = vadd.f32 %v169, %v188
    %190 = vdwg.mxu0
    %191 = vmatpush.xpose.msra.mxu0 %v143
    %192 = vmatpush.xpose.msra.mxu0 %v137
    %193 = vmatpush.xpose.msra.mxu0 %v131
    %194 = vmatpush.xpose.msra.mxu0 %v125
    %195 = vmatpush.xpose.msra.mxu0 %v119
    %196 = vmatpush.xpose.msra.mxu0 %v113
    %197 = vmatpush.xpose.msra.mxu0 %v107
    %198 = vmatpush.xpose.msra.mxu0 %v101
    %199 = vmatpush.xpose.msra.mxu0 %v95
    %200 = vmatpush.xpose.msra.mxu0 %v89
    %201 = vmatpush.xpose.msra.mxu0 %v83
    %202 = vmatpush.xpose.msra.mxu0 %v77
    %203 = vmatpush.xpose.msra.mxu0 %v71
    %204 = vmatpush.xpose.msra.mxu0 %v65
    %205 = vmatpush.xpose.msra.mxu0 %v59
    %206 = vmatpush.xpose.msra.mxu0 %v53
    %207 = vmatmul.f32.gmra.mxu0 %v47
    %v208 = vpop.f32.mrf.mxu0
    %v209 = vadd.f32 %v189, %v208
    %210 = vdwg.mxu0
    %211 = vmatpush.xpose.msra.mxu0 %v144
    %212 = vmatpush.xpose.msra.mxu0 %v138
    %213 = vmatpush.xpose.msra.mxu0 %v132
    %214 = vmatpush.xpose.msra.mxu0 %v126
    %215 = vmatpush.xpose.msra.mxu0 %v120
    %216 = vmatpush.xpose.msra.mxu0 %v114
    %217 = vmatpush.xpose.msra.mxu0 %v108
    %218 = vmatpush.xpose.msra.mxu0 %v102
    %219 = vmatpush.xpose.msra.mxu0 %v96
    %220 = vmatpush.xpose.msra.mxu0 %v90
    %221 = vmatpush.xpose.msra.mxu0 %v84
    %222 = vmatpush.xpose.msra.mxu0 %v78
    %223 = vmatpush.xpose.msra.mxu0 %v72
    %224 = vmatpush.xpose.msra.mxu0 %v66
    %225 = vmatpush.xpose.msra.mxu0 %v60
    %226 = vmatpush.xpose.msra.mxu0 %v54
    %227 = vmatmul.f32.gmra.mxu0 %v48
    %v228 = vpop.f32.mrf.mxu0
    %v229 = vadd.f32 %v209, %v228
    %230 = vdwg.mxu0
    %231 = vmatpush.xpose.msra.mxu0 %v145
    %232 = vmatpush.xpose.msra.mxu0 %v139
    %233 = vmatpush.xpose.msra.mxu0 %v133
    %234 = vmatpush.xpose.msra.mxu0 %v127
    %235 = vmatpush.xpose.msra.mxu0 %v121
    %236 = vmatpush.xpose.msra.mxu0 %v115
    %237 = vmatpush.xpose.msra.mxu0 %v109
    %238 = vmatpush.xpose.msra.mxu0 %v103
    %239 = vmatpush.xpose.msra.mxu0 %v97
    %240 = vmatpush.xpose.msra.mxu0 %v91
    %241 = vmatpush.xpose.msra.mxu0 %v85
    %242 = vmatpush.xpose.msra.mxu0 %v79
    %243 = vmatpush.xpose.msra.mxu0 %v73
    %244 = vmatpush.xpose.msra.mxu0 %v67
    %245 = vmatpush.xpose.msra.mxu0 %v61
    %246 = vmatpush.xpose.msra.mxu0 %v55
    %247 = vmatmul.f32.gmra.mxu0 %v49
    %v248 = vpop.f32.mrf.mxu0
    %v249 = vadd.f32 %v229, %v248
    %250 = vdwg.mxu0
    %251 = vmatpush.xpose.msra.mxu0 %v146
    %252 = vmatpush.xpose.msra.mxu0 %v140
    %253 = vmatpush.xpose.msra.mxu0 %v134
    %254 = vmatpush.xpose.msra.mxu0 %v128
    %255 = vmatpush.xpose.msra.mxu0 %v122
    %256 = vmatpush.xpose.msra.mxu0 %v116
    %257 = vmatpush.xpose.msra.mxu0 %v110
    %258 = vmatpush.xpose.msra.mxu0 %v104
    %259 = vmatpush.xpose.msra.mxu0 %v98
    %260 = vmatpush.xpose.msra.mxu0 %v92
    %261 = vmatpush.xpose.msra.mxu0 %v86
    %262 = vmatpush.xpose.msra.mxu0 %v80
    %263 = vmatpush.xpose.msra.mxu0 %v74
    %264 = vmatpush.xpose.msra.mxu0 %v68
    %265 = vmatpush.xpose.msra.mxu0 %v62
    %266 = vmatpush.xpose.msra.mxu0 %v56
    %267 = vmatmul.f32.gmra.mxu0 %v50
    %v268 = vpop.f32.mrf.mxu0
    %v269 = vadd.f32 %v249, %v268
    %270 = vdwg.mxu0
    %271 = vst [vmem:[#allocation7] sm:$0xff] %v269
    // Predicated region
    $region22: #{tpu_custom_call.1} parent=1 // pred_check
      _
    $region23: #{tpu_custom_call.1} parent=1 // pred_check_branch
      %273 = sbr.rel (0) target = $region25
    $region24: #{tpu_custom_call.1} parent=1 // pred_region
      %275 = vsyncadd [#allocation4], 0
      %s277 = sshll.u32 [#allocation7], 4
      %s278 = int_to_ptr.vmem [resolvable:$true] %s277
      %s279 = sshll.u32 %s3, 4
      %s280 = int_to_ptr.hbm [resolvable:$true] %s279
      %282 = dma.vmem_to_hbm [thread:$0]  %s278, 128, %s280, [#allocation4]
    $region25: #{tpu_custom_call.1} parent=1 // pred_fallthru
      _
    // Predicated region
    $region26: #{tpu_custom_call.1} parent=1 // pred_check
      _
    $region27: #{tpu_custom_call.1} parent=1 // pred_check_branch
      %284 = sbr.rel (0) target = $region29
    $region28: #{tpu_custom_call.1} parent=1 // pred_region
      %286 = dma.done [#allocation4], 128
    $region29: #{tpu_custom_call.1} parent=1 // pred_fallthru
      _
    %287 = vsyncpa [#allocation3], 1
    %288 = vsyncpa [#allocation6], 1
    %289 = vsyncpa [#allocation4], 1

</llo_original>
